<compile_context>
chip_gen: v6e
topology: v6e:2x2x1
jax: 0.10.0
libtpu: 0.0.40
codegen_flags: <defaults>
</compile_context>

<pallas_src>
import jax
import jax.numpy as jnp
from jax import lax
from jax.experimental import pallas as pl
from jax.experimental.pallas import tpu as pltpu

# ---- small config (scaled-down GPT_CONFIG_124M) ----
CFG = {
    "vocab_size": 512,
    "context_length": 64,
    "emb_dim": 128,
    "n_heads": 4,
    "n_layers": 2,
    "drop_rate": 0.1,
    "qkv_bias": False,
}


def _dummy_gpt_kernel(idx_ref, tok_ref, pos_ref, w_ref, o_ref):
    """Fused DummyGPTModel forward for one (T, V) logits slab.

    idx_ref : (T, 1)  int32  flattened token ids
    tok_ref : (V, D)  bf16   token-embedding table
    pos_ref : (S, D)  bf16   positional-embedding table (first S rows)
    w_ref   : (D, V)  bf16   output-head weight, already transposed
    o_ref   : (T, V)  f32    logits
    """
    T = idx_ref.shape[0]
    V = tok_ref.shape[0]
    S = pos_ref.shape[0]

    # --- token-embedding gather as a one-hot matmul on the MXU ---
    ids = idx_ref[...]                                              # (T, 1) i32
    vocab_iota = lax.broadcasted_iota(jnp.int32, (T, V), 1)         # (T, V) i32
    tok_onehot = jnp.where(ids == vocab_iota, 1.0, 0.0).astype(jnp.bfloat16)
    tok = jnp.dot(tok_onehot, tok_ref[...],
                  preferred_element_type=jnp.float32)               # (T, D) f32

    # --- positional-embedding gather: row t uses position t % S -------------
    # (rows are (batch, seq) flattened row-major, so t % S is the seq index)
    row_iota = lax.broadcasted_iota(jnp.int32, (T, S), 0)
    seq_iota = lax.broadcasted_iota(jnp.int32, (T, S), 1)
    pos_onehot = jnp.where((row_iota % S) == seq_iota, 1.0, 0.0).astype(jnp.bfloat16)
    pos = jnp.dot(pos_onehot, pos_ref[...],
                  preferred_element_type=jnp.float32)               # (T, D) f32

    # dropout / transformer blocks / final norm are identity in DummyGPTModel.
    x = (tok + pos).astype(jnp.bfloat16)                            # (T, D) bf16

    # --- output head: logits = x @ W_out^T ---
    o_ref[...] = jnp.dot(x, w_ref[...], preferred_element_type=jnp.float32)


def dummy_gpt_forward(in_idx, tok_emb, pos_emb, w_out_t):
    """Pallas implementation of DummyGPTModel.forward.

    in_idx : (B, S) int32 token ids
    tok_emb: (V, D) float32 token-embedding table
    pos_emb: (C, D) float32 positional-embedding table
    w_out_t: (D, V) float32 output head weight (Linear weight transposed)
    returns: (B, S, V) float32 logits
    """
    B, S = in_idx.shape
    V, D = tok_emb.shape
    assert w_out_t.shape == (D, V)
    assert S <= pos_emb.shape[0]
    assert D % 128 == 0 and V % 128 == 0
    T = B * S

    idx = in_idx.reshape(T, 1).astype(jnp.int32)
    tok = tok_emb.astype(jnp.bfloat16)            # (V, D)
    pos = pos_emb[:S].astype(jnp.bfloat16)        # (S, D)
    w = w_out_t.astype(jnp.bfloat16)              # (D, V)

    cost = pl.CostEstimate(
        flops=2 * T * V * D + 2 * T * S * D + 2 * T * D * V,
        transcendentals=0,
        bytes_accessed=T * 4 + V * D * 2 + S * D * 2 + D * V * 2 + T * V * 4,
    )

    out = pl.pallas_call(
        _dummy_gpt_kernel,
        out_shape=jax.ShapeDtypeStruct((T, V), jnp.float32),
        # Single invocation, no grid: every operand resident in VMEM.
        in_specs=[
            pl.BlockSpec(memory_space=pltpu.MemorySpace.VMEM),   # idx
            pl.BlockSpec(memory_space=pltpu.MemorySpace.VMEM),   # tok_emb
            pl.BlockSpec(memory_space=pltpu.MemorySpace.VMEM),   # pos_emb
            pl.BlockSpec(memory_space=pltpu.MemorySpace.VMEM),   # W_out^T
        ],
        out_specs=pl.BlockSpec(memory_space=pltpu.MemorySpace.VMEM),
        cost_estimate=cost,
    )(idx, tok, pos, w)

    return out.reshape(B, S, V)


def _init_params(key, cfg):
    kv, kp, kw = jax.random.split(key, 3)
    V, C, D = cfg["vocab_size"], cfg["context_length"], cfg["emb_dim"]
    tok_emb = jax.random.normal(kv, (V, D), dtype=jnp.float32) * 0.02
    pos_emb = jax.random.normal(kp, (C, D), dtype=jnp.float32) * 0.02
    # nn.Linear(emb_dim, vocab_size, bias=False).weight has shape (V, D);
    # store the transpose (D, V) so the kernel does x @ W^T directly.
    w_out = jax.random.normal(kw, (V, D), dtype=jnp.float32) * 0.02
    return tok_emb, pos_emb, w_out.T


def _reference(in_idx, tok_emb, pos_emb, w_out_t):
    """Pure-JAX reference following the same bf16-operand / f32-accumulate recipe."""
    B, S = in_idx.shape
    tok = tok_emb.astype(jnp.bfloat16).astype(jnp.float32)[in_idx]          # (B,S,D)
    pos = pos_emb[:S].astype(jnp.bfloat16).astype(jnp.float32)[None, :, :]  # (1,S,D)
    x = (tok + pos).astype(jnp.bfloat16)   # dropout / blocks / norm are identity
    w = w_out_t.astype(jnp.bfloat16)
    return jnp.einsum("bsd,dv->bsv", x, w, preferred_element_type=jnp.float32)


if __name__ == "__main__":
    key = jax.random.PRNGKey(0)
    k_idx, k_param = jax.random.split(key)

    B, S = 2, 8
    in_idx = jax.random.randint(k_idx, (B, S), 0, CFG["vocab_size"], dtype=jnp.int32)

    tok_emb, pos_emb, w_out_t = _init_params(k_param, CFG)

    logits = dummy_gpt_forward(in_idx, tok_emb, pos_emb, w_out_t)
    logits = jax.block_until_ready(logits)

    ref = _reference(in_idx, tok_emb, pos_emb, w_out_t)
    assert logits.shape == (B, S, CFG["vocab_size"])
    assert jnp.allclose(logits, ref, atol=2e-4, rtol=1e-3)

    print("KERNEL_OK")
</pallas_src>

<mosaic_0001>
module attributes {stable_mosaic.version = 11 : i64} {
  func.func @_dummy_gpt_kernel(%arg0: memref<16x1xi32, #tpu.memory_space<vmem>>, %arg1: memref<512x128xbf16, #tpu.memory_space<vmem>>, %arg2: memref<8x128xbf16, #tpu.memory_space<vmem>>, %arg3: memref<128x512xbf16, #tpu.memory_space<vmem>>, %arg4: memref<16x512xf32, #tpu.memory_space<vmem>>) attributes {dimension_semantics = [], scalar_prefetch = 0 : i64, scratch_operands = 0 : i64, tpu.core_type = #tpu.core_type<tc>} {
    %c0 = arith.constant 0 : index
    %c0_0 = arith.constant 0 : index
    %0 = vector.load %arg0[%c0, %c0_0] : memref<16x1xi32, #tpu.memory_space<vmem>>, vector<16x1xi32>
    %1 = tpu.iota {dimensions = array<i32: 1>} : vector<16x512xi32>
    %2 = vector.broadcast %0 : vector<16x1xi32> to vector<16x512xi32>
    %3 = arith.cmpi eq, %2, %1 : vector<16x512xi32>
    %cst = arith.constant 1.000000e+00 : f32
    %cst_1 = arith.constant 0.000000e+00 : f32
    %4 = vector.broadcast %cst : f32 to vector<16x512xf32>
    %5 = vector.broadcast %cst_1 : f32 to vector<16x512xf32>
    %6 = arith.select %3, %4, %5 : vector<16x512xi1>, vector<16x512xf32>
    %7 = arith.truncf %6 : vector<16x512xf32> to vector<16x512xbf16>
    %c0_2 = arith.constant 0 : index
    %c0_3 = arith.constant 0 : index
    %8 = vector.load %arg1[%c0_2, %c0_3] : memref<512x128xbf16, #tpu.memory_space<vmem>>, vector<512x128xbf16>
    %cst_4 = arith.constant dense<0.000000e+00> : vector<16x128xf32>
    %9 = tpu.matmul %7, %8, %cst_4 {dimension_numbers = #tpu.dot_dimension_numbers<[1], [0], [0], [1], [0, 0, 1, 1], [], []>} : vector<16x512xbf16>, vector<512x128xbf16>, vector<16x128xf32> -> vector<16x128xf32>
    %10 = tpu.iota {dimensions = array<i32: 0>} : vector<16x8xi32>
    %11 = tpu.iota {dimensions = array<i32: 1>} : vector<16x8xi32>
    %c8_i32 = arith.constant 8 : i32
    %c0_i32 = arith.constant 0 : i32
    %12 = arith.cmpi eq, %c8_i32, %c0_i32 : i32
    %c1_i32 = arith.constant 1 : i32
    %13 = arith.select %12, %c1_i32, %c8_i32 : i32
    %14 = vector.broadcast %13 : i32 to vector<16x8xi32>
    %15 = arith.remsi %10, %14 : vector<16x8xi32>
    %c0_i32_5 = arith.constant 0 : i32
    %16 = vector.broadcast %c0_i32_5 : i32 to vector<16x8xi32>
    %17 = arith.cmpi ne, %15, %16 : vector<16x8xi32>
    %c0_i32_6 = arith.constant 0 : i32
    %18 = vector.broadcast %c0_i32_6 : i32 to vector<16x8xi32>
    %19 = arith.cmpi slt, %15, %18 : vector<16x8xi32>
    %c0_i32_7 = arith.constant 0 : i32
    %20 = arith.cmpi slt, %13, %c0_i32_7 : i32
    %21 = vector.broadcast %20 : i1 to vector<16x8xi1>
    %22 = vector.broadcast %21 : vector<16x8xi1> to vector<16x8xi1>
    %23 = arith.xori %19, %22 : vector<16x8xi1>
    %24 = arith.andi %23, %17 : vector<16x8xi1>
    %25 = vector.broadcast %13 : i32 to vector<16x8xi32>
    %26 = arith.addi %15, %25 : vector<16x8xi32>
    %27 = arith.select %24, %26, %15 : vector<16x8xi1>, vector<16x8xi32>
    %28 = arith.cmpi eq, %27, %11 : vector<16x8xi32>
    %cst_8 = arith.constant 1.000000e+00 : f32
    %cst_9 = arith.constant 0.000000e+00 : f32
    %29 = vector.broadcast %cst_8 : f32 to vector<16x8xf32>
    %30 = vector.broadcast %cst_9 : f32 to vector<16x8xf32>
    %31 = arith.select %28, %29, %30 : vector<16x8xi1>, vector<16x8xf32>
    %32 = arith.truncf %31 : vector<16x8xf32> to vector<16x8xbf16>
    %c0_10 = arith.constant 0 : index
    %c0_11 = arith.constant 0 : index
    %33 = vector.load %arg2[%c0_10, %c0_11] : memref<8x128xbf16, #tpu.memory_space<vmem>>, vector<8x128xbf16>
    %cst_12 = arith.constant dense<0.000000e+00> : vector<16x128xf32>
    %34 = tpu.matmul %32, %33, %cst_12 {dimension_numbers = #tpu.dot_dimension_numbers<[1], [0], [0], [1], [0, 0, 1, 1], [], []>} : vector<16x8xbf16>, vector<8x128xbf16>, vector<16x128xf32> -> vector<16x128xf32>
    %35 = arith.addf %9, %34 : vector<16x128xf32>
    %36 = arith.truncf %35 : vector<16x128xf32> to vector<16x128xbf16>
    %c0_13 = arith.constant 0 : index
    %c0_14 = arith.constant 0 : index
    %37 = vector.load %arg3[%c0_13, %c0_14] : memref<128x512xbf16, #tpu.memory_space<vmem>>, vector<128x512xbf16>
    %cst_15 = arith.constant dense<0.000000e+00> : vector<16x512xf32>
    %38 = tpu.matmul %36, %37, %cst_15 {dimension_numbers = #tpu.dot_dimension_numbers<[1], [0], [0], [1], [0, 0, 1, 1], [], []>} : vector<16x128xbf16>, vector<128x512xbf16>, vector<16x512xf32> -> vector<16x512xf32>
    %c0_16 = arith.constant 0 : index
    %c0_17 = arith.constant 0 : index
    %39 = vector.load %arg4[%c0_16, %c0_17] : memref<16x512xf32, #tpu.memory_space<vmem>>, vector<16x512xf32>
    tpu.vector_store %arg4[%c0_16, %c0_17], %38 {strides = array<i32>} : memref<16x512xf32, #tpu.memory_space<vmem>>, vector<16x512xf32>,
    return
  }
}

</mosaic_0001>

<llo_original>
// kernel: tpu_custom_call.1
$region0: #{tpu_custom_call.1}
  #allocation0 [shape = 'u32[]', space=smem, size = 0x4, offset = 0x4, fixed_abs, tag = 'smem constant byte address 0x4 - core index']
  #allocation1 [shape = 'u32[144,128]{1,0:T(1,128)}', space=vmem, size = 0x12000, scoped, tag = 'internal scratch']
  %s0 = inlined_call_operand.vmem [shape: s32[16,1], index: 0, kind: input, shape index: {}]
  %s1 = inlined_call_operand.hbm [shape: bf16[512,128], index: 1, kind: input, shape index: {}]
  %s2 = inlined_call_operand.vmem [shape: bf16[8,128], index: 2, kind: input, shape index: {}]
  %s3 = inlined_call_operand.hbm [shape: bf16[128,512], index: 3, kind: input, shape index: {}]
  %s4 = inlined_call_operand.hbm [shape: f32[16,512], index: 4, kind: output, shape index: {}]
  %s5 = sld [smem:[#allocation0]]
  $region34: #{tpu_custom_call.1} parent=0
    _
  %s7 = ssub.s32 1, %s5
  %s8 = scalar_select 0, %s7, %s5
  $region1: #{tpu_custom_call.1} parent=0
    #allocation2 [shape = 'u8[131072]{0}', space=vmem, size = 0x20000, scoped, tag = 'input window, operand 1, single buffered']
    #allocation3 [shape = 's32[1]{0}', space=sflag, size = 0x4, scoped, tag = 'scoped memory for tpu_custom_call.1']
    #allocation4 [shape = 's32[1]{0}', space=sflag, size = 0x4, scoped, tag = 'scoped memory for tpu_custom_call.1']
    #allocation5 [shape = 'u8[131072]{0}', space=vmem, size = 0x20000, scoped, tag = 'input window, operand 3, single buffered']
    #allocation6 [shape = 's32[1]{0}', space=sflag, size = 0x4, scoped, tag = 'scoped memory for tpu_custom_call.1']
    #allocation7 [shape = 'u8[32768]{0}', space=vmem, size = 0x8000, scoped, tag = 'output window, operand 0, single buffered']
    %9 = vsyncpa [#allocation3], 0
    %10 = vsyncpa [#allocation6], 0
    %11 = vsyncpa [#allocation4], 0
    // Predicated region
    $region2: #{tpu_custom_call.1} parent=1 // pred_check
      _
    $region3: #{tpu_custom_call.1} parent=1 // pred_check_branch
      %13 = sbr.rel (0) target = $region5
    $region4: #{tpu_custom_call.1} parent=1 // pred_region
      _
    $region5: #{tpu_custom_call.1} parent=1 // pred_fallthru
      _
    // Predicated region
    $region6: #{tpu_custom_call.1} parent=1 // pred_check
      _
    $region7: #{tpu_custom_call.1} parent=1 // pred_check_branch
      %15 = sbr.rel (0) target = $region9
    $region8: #{tpu_custom_call.1} parent=1 // pred_region
      %s17 = ssub.s32 4096, 4096
      %18 = vsyncadd [#allocation3], %s17
      %s19 = sshll.u32 [#allocation2], 4
      %s20 = int_to_ptr.vmem [resolvable:$true] %s19
      %25 = dma.hbm_to_vmem [thread:$0]  %s1, 4096, %s20, [#allocation3], 64, 64, 4
    $region9: #{tpu_custom_call.1} parent=1 // pred_fallthru
      _
    // Predicated region
    $region10: #{tpu_custom_call.1} parent=1 // pred_check
      _
    $region11: #{tpu_custom_call.1} parent=1 // pred_check_branch
      %27 = sbr.rel (0) target = $region13
    $region12: #{tpu_custom_call.1} parent=1 // pred_region
      _
    $region13: #{tpu_custom_call.1} parent=1 // pred_fallthru
      _
    // Predicated region
    $region14: #{tpu_custom_call.1} parent=1 // pred_check
      _
    $region15: #{tpu_custom_call.1} parent=1 // pred_check_branch
      %29 = sbr.rel (0) target = $region17
    $region16: #{tpu_custom_call.1} parent=1 // pred_region
      %s31 = ssub.s32 4096, 4096
      %32 = vsyncadd [#allocation6], %s31
      %s33 = sshll.u32 [#allocation5], 4
      %s34 = int_to_ptr.vmem [resolvable:$true] %s33
      %39 = dma.hbm_to_vmem [thread:$0]  %s3, 4096, %s34, [#allocation6], 256, 256, 16
    $region17: #{tpu_custom_call.1} parent=1 // pred_fallthru
      _
    // Predicated region
    $region18: #{tpu_custom_call.1} parent=1 // pred_check
      _
    $region19: #{tpu_custom_call.1} parent=1 // pred_check_branch
      %41 = sbr.rel (0) target = $region21
    $region20: #{tpu_custom_call.1} parent=1 // pred_region
      %42 = dma.done [#allocation3], 4096
    $region21: #{tpu_custom_call.1} parent=1 // pred_fallthru
      _
    // Predicated region
    $region22: #{tpu_custom_call.1} parent=1 // pred_check
      _
    $region23: #{tpu_custom_call.1} parent=1 // pred_check_branch
      %44 = sbr.rel (0) target = $region25
    $region24: #{tpu_custom_call.1} parent=1 // pred_region
      %45 = dma.done [#allocation6], 4096
    $region25: #{tpu_custom_call.1} parent=1 // pred_fallthru
      _
    %v47 = vld [vmem:[%s0] sm:$0xff]
    %v48 = vld [vmem:[%s0 + $0x8] sm:$0xff]
    %v49 = vlaneseq
    %v50 = vand.u32 %v49, 127
    %v51 = vadd.s32 %v50, 128
    %v52 = vadd.s32 %v50, 256
    %v53 = vadd.s32 %v50, 384
    %54 = vset.pattern.permute.xlu0 0
    %55 = vperm.xlu0 %54, %v47
    %v56 = vpop.permute.xlu0 %55
    %57 = vset.pattern.permute.xlu0 0
    %58 = vperm.xlu0 %57, %v48
    %v59 = vpop.permute.xlu0 %58
    %vm60 = vcmp.eq.s32.totalorder %v56, %v50
    %vm61 = vcmp.eq.s32.totalorder %v56, %v51
    %vm62 = vcmp.eq.s32.totalorder %v56, %v52
    %vm63 = vcmp.eq.s32.totalorder %v56, %v53
    %vm64 = vcmp.eq.s32.totalorder %v59, %v50
    %vm65 = vcmp.eq.s32.totalorder %v59, %v51
    %vm66 = vcmp.eq.s32.totalorder %v59, %v52
    %vm67 = vcmp.eq.s32.totalorder %v59, %v53
    %v68 = vsel %vm60, 1.0, 0.0
    %v69 = vsel %vm61, 1.0, 0.0
    %v70 = vsel %vm62, 1.0, 0.0
    %v71 = vsel %vm63, 1.0, 0.0
    %v72 = vsel %vm64, 1.0, 0.0
    %v73 = vsel %vm65, 1.0, 0.0
    %v74 = vsel %vm66, 1.0, 0.0
    %v75 = vsel %vm67, 1.0, 0.0
    %v76 = vpack.c.bf16 %v72, %v68
    %v77 = vpack.c.bf16 %v73, %v69
    %v78 = vpack.c.bf16 %v74, %v70
    %v79 = vpack.c.bf16 %v75, %v71
    %v80 = vld [vmem:[#allocation2] sm:$0xf]
    %v81 = vld [vmem:[#allocation2 + $0x4] sm:$0xf]
    %v82 = vld [vmem:[#allocation2 + $0x8] sm:$0xf]
    %v83 = vld [vmem:[#allocation2 + $0xc] sm:$0xf]
    %v84 = vld [vmem:[#allocation2 + $0x10] sm:$0xf]
    %v85 = vld [vmem:[#allocation2 + $0x14] sm:$0xf]
    %v86 = vld [vmem:[#allocation2 + $0x18] sm:$0xf]
    %v87 = vld [vmem:[#allocation2 + $0x1c] sm:$0xf]
    %v88 = vld [vmem:[#allocation2 + $0x20] sm:$0xf]
    %v89 = vld [vmem:[#allocation2 + $0x24] sm:$0xf]
    %v90 = vld [vmem:[#allocation2 + $0x28] sm:$0xf]
    %v91 = vld [vmem:[#allocation2 + $0x2c] sm:$0xf]
    %v92 = vld [vmem:[#allocation2 + $0x30] sm:$0xf]
    %v93 = vld [vmem:[#allocation2 + $0x34] sm:$0xf]
    %v94 = vld [vmem:[#allocation2 + $0x38] sm:$0xf]
    %v95 = vld [vmem:[#allocation2 + $0x3c] sm:$0xf]
    %v96 = vld [vmem:[#allocation2 + $0x40] sm:$0xf]
    %v97 = vld [vmem:[#allocation2 + $0x44] sm:$0xf]
    %v98 = vld [vmem:[#allocation2 + $0x48] sm:$0xf]
    %v99 = vld [vmem:[#allocation2 + $0x4c] sm:$0xf]
    %v100 = vld [vmem:[#allocation2 + $0x50] sm:$0xf]
    %v101 = vld [vmem:[#allocation2 + $0x54] sm:$0xf]
    %v102 = vld [vmem:[#allocation2 + $0x58] sm:$0xf]
    %v103 = vld [vmem:[#allocation2 + $0x5c] sm:$0xf]
    %v104 = vld [vmem:[#allocation2 + $0x60] sm:$0xf]
    %v105 = vld [vmem:[#allocation2 + $0x64] sm:$0xf]
    %v106 = vld [vmem:[#allocation2 + $0x68] sm:$0xf]
    %v107 = vld [vmem:[#allocation2 + $0x6c] sm:$0xf]
    %v108 = vld [vmem:[#allocation2 + $0x70] sm:$0xf]
    %v109 = vld [vmem:[#allocation2 + $0x74] sm:$0xf]
    %v110 = vld [vmem:[#allocation2 + $0x78] sm:$0xf]
    %v111 = vld [vmem:[#allocation2 + $0x7c] sm:$0xf]
    %v112 = vld [vmem:[#allocation2 + $0x80] sm:$0xf]
    %v113 = vld [vmem:[#allocation2 + $0x84] sm:$0xf]
    %v114 = vld [vmem:[#allocation2 + $0x88] sm:$0xf]
    %v115 = vld [vmem:[#allocation2 + $0x8c] sm:$0xf]
    %v116 = vld [vmem:[#allocation2 + $0x90] sm:$0xf]
    %v117 = vld [vmem:[#allocation2 + $0x94] sm:$0xf]
    %v118 = vld [vmem:[#allocation2 + $0x98] sm:$0xf]
    %v119 = vld [vmem:[#allocation2 + $0x9c] sm:$0xf]
    %v120 = vld [vmem:[#allocation2 + $0xa0] sm:$0xf]
    %v121 = vld [vmem:[#allocation2 + $0xa4] sm:$0xf]
    %v122 = vld [vmem:[#allocation2 + $0xa8] sm:$0xf]
    %v123 = vld [vmem:[#allocation2 + $0xac] sm:$0xf]
    %v124 = vld [vmem:[#allocation2 + $0xb0] sm:$0xf]
    %v125 = vld [vmem:[#allocation2 + $0xb4] sm:$0xf]
    %v126 = vld [vmem:[#allocation2 + $0xb8] sm:$0xf]
    %v127 = vld [vmem:[#allocation2 + $0xbc] sm:$0xf]
    %v128 = vld [vmem:[#allocation2 + $0xc0] sm:$0xf]
    %v129 = vld [vmem:[#allocation2 + $0xc4] sm:$0xf]
    %v130 = vld [vmem:[#allocation2 + $0xc8] sm:$0xf]
    %v131 = vld [vmem:[#allocation2 + $0xcc] sm:$0xf]
    %v132 = vld [vmem:[#allocation2 + $0xd0] sm:$0xf]
    %v133 = vld [vmem:[#allocation2 + $0xd4] sm:$0xf]
    %v134 = vld [vmem:[#allocation2 + $0xd8] sm:$0xf]
    %v135 = vld [vmem:[#allocation2 + $0xdc] sm:$0xf]
    %v136 = vld [vmem:[#allocation2 + $0xe0] sm:$0xf]
    %v137 = vld [vmem:[#allocation2 + $0xe4] sm:$0xf]
    %v138 = vld [vmem:[#allocation2 + $0xe8] sm:$0xf]
    %v139 = vld [vmem:[#allocation2 + $0xec] sm:$0xf]
    %v140 = vld [vmem:[#allocation2 + $0xf0] sm:$0xf]
    %v141 = vld [vmem:[#allocation2 + $0xf4] sm:$0xf]
    %v142 = vld [vmem:[#allocation2 + $0xf8] sm:$0xf]
    %v143 = vld [vmem:[#allocation2 + $0xfc] sm:$0xf]
    %v144 = vlaneseq
    %v145 = vshrl.u32 %v144, 7
    %v146 = vadd.s32 %v145, 8
    %vm147 = vcmp.lt.s32.totalorder %v145, 0
    %v148 = vsub.s32 0, %v145
    %v149 = vsel %vm147, %v148, %v145
    %v150 = vshrl.u32 %v149, 3
    %v151 = vand.u32 %v149, 7
    %v152 = vsub.s32 0, %v151
    %v153 = vsel %vm147, %v152, %v151
    %vm154 = vcmp.lt.s32.totalorder %v146, 0
    %v155 = vsub.s32 0, %v146
    %v156 = vsel %vm154, %v155, %v146
    %v157 = vshrl.u32 %v156, 3
    %v158 = vand.u32 %v156, 7
    %v159 = vsub.s32 0, %v158
    %v160 = vsel %vm154, %v159, %v158
    %vm161 = vcmp.ne.s32.totalorder %v153, 0
    %vm162 = vcmp.ne.s32.totalorder %v160, 0
    %vm163 = vcmp.lt.s32.totalorder %v153, 0
    %vm164 = vcmp.lt.s32.totalorder %v160, 0
    %vm165 = vmand %vm163, %vm161
    %vm166 = vmand %vm164, %vm162
    %v167 = vadd.s32 %v153, 8
    %v168 = vadd.s32 %v160, 8
    %v169 = vsel %vm165, %v167, %v153
    %v170 = vsel %vm166, %v168, %v160
    %vm171 = vcmp.eq.s32.totalorder %v169, %v50
    %vm172 = vcmp.eq.s32.totalorder %v170, %v50
    %v173 = vsel %vm171, 1.0, 0.0
    %v174 = vsel %vm172, 1.0, 0.0
    %v175 = vpack.c.bf16 %v174, %v173
    %v176 = vld [vmem:[%s2] sm:$0xf]
    %vm177 = vcmask 64512
    %v179 = vsel %vm177, %v175, 0
    %vm181 = vcmask 1043456
    %v183 = vsel %vm181, %v176, 0
    %185 = vmatprep.subr.bf16.mxu0 0
    %186 = vmatpush1.bf16.msra.mxu0 0
    %187 = vmatprep.subr.bf16.mxu0 0
    %188 = vmatpush1.bf16.msra.mxu0 0
    %189 = vmatprep.subr.bf16.mxu0 0
    %190 = vmatpush1.bf16.msra.mxu0 0
    %191 = vmatprep.subr.bf16.mxu0 0
    %192 = vmatpush1.bf16.msra.mxu0 0
    %193 = vmatprep.subr.bf16.mxu0 0
    %194 = vmatpush1.bf16.msra.mxu0 0
    %195 = vmatprep.subr.bf16.mxu0 0
    %196 = vmatpush1.bf16.msra.mxu0 0
    %197 = vmatprep.subr.bf16.mxu0 0
    %198 = vmatpush1.bf16.msra.mxu0 0
    %199 = vmatprep.subr.bf16.mxu0 0
    %200 = vmatpush1.bf16.msra.mxu0 %v183
    %201 = vmatprep.subr.bf16.mxu0 0
    %202 = vmatpush2.bf16.msra.mxu0 0
    %203 = vmatprep.subr.bf16.mxu0 0
    %204 = vmatpush2.bf16.msra.mxu0 0
    %205 = vmatprep.subr.bf16.mxu0 0
    %206 = vmatpush2.bf16.msra.mxu0 0
    %207 = vmatprep.subr.bf16.mxu0 0
    %208 = vmatpush2.bf16.msra.mxu0 0
    %209 = vmatprep.subr.bf16.mxu0 0
    %210 = vmatpush2.bf16.msra.mxu0 0
    %211 = vmatprep.subr.bf16.mxu0 0
    %212 = vmatpush2.bf16.msra.mxu0 0
    %213 = vmatprep.subr.bf16.mxu0 0
    %214 = vmatpush2.bf16.msra.mxu0 0
    %215 = vmatprep.subr.bf16.mxu0 0
    %216 = vmatpush2.bf16.msra.mxu0 0
    %217 = vmatprep.mubr.bf16.mxu0 0
    %218 = vmatmul.mubr.bf16.gmra.mxu0 %v179
    %v219 = vpop.f32.mrf.mxu0
    %v220 = vadd.f32 0.0, %v219
    %v221 = vpop.f32.mrf.mxu0
    %v222 = vpop.f32.mrf.mxu0
    %v223 = vadd.f32 0.0, %v222
    %v224 = vpop.f32.mrf.mxu0
    %225 = vdwg.mxu0
    %v290 = vunpack.c.l.b16 %v80
    %v291 = vunpack.c.l.b16 %v81
    %v292 = vunpack.c.l.b16 %v82
    %v293 = vunpack.c.l.b16 %v83
    %v294 = vunpack.c.l.b16 %v84
    %v295 = vunpack.c.l.b16 %v85
    %v296 = vunpack.c.l.b16 %v86
    %v297 = vunpack.c.l.b16 %v87
    %v298 = vunpack.c.l.b16 %v88
    %v299 = vunpack.c.l.b16 %v89
    %v300 = vunpack.c.l.b16 %v90
    %v301 = vunpack.c.l.b16 %v91
    %v302 = vunpack.c.l.b16 %v92
    %v303 = vunpack.c.l.b16 %v93
    %v304 = vunpack.c.l.b16 %v94
    %v305 = vunpack.c.l.b16 %v95
    %v306 = vunpack.c.l.b16 %v96
    %v307 = vunpack.c.l.b16 %v97
    %v308 = vunpack.c.l.b16 %v98
    %v309 = vunpack.c.l.b16 %v99
    %v310 = vunpack.c.l.b16 %v100
    %v311 = vunpack.c.l.b16 %v101
    %v312 = vunpack.c.l.b16 %v102
    %v313 = vunpack.c.l.b16 %v103
    %v314 = vunpack.c.l.b16 %v104
    %v315 = vunpack.c.l.b16 %v105
    %v316 = vunpack.c.l.b16 %v106
    %v317 = vunpack.c.l.b16 %v107
    %v318 = vunpack.c.l.b16 %v108
    %v319 = vunpack.c.l.b16 %v109
    %v320 = vunpack.c.l.b16 %v110
    %v321 = vunpack.c.l.b16 %v111
    %v322 = vunpack.c.l.b16 %v112
    %v323 = vunpack.c.l.b16 %v113
    %v324 = vunpack.c.l.b16 %v114
    %v325 = vunpack.c.l.b16 %v115
    %v326 = vunpack.c.l.b16 %v116
    %v327 = vunpack.c.l.b16 %v117
    %v328 = vunpack.c.l.b16 %v118
    %v329 = vunpack.c.l.b16 %v119
    %v330 = vunpack.c.l.b16 %v120
    %v331 = vunpack.c.l.b16 %v121
    %v332 = vunpack.c.l.b16 %v122
    %v333 = vunpack.c.l.b16 %v123
    %v334 = vunpack.c.l.b16 %v124
    %v335 = vunpack.c.l.b16 %v125
    %v336 = vunpack.c.l.b16 %v126
    %v337 = vunpack.c.l.b16 %v127
    %v338 = vunpack.c.l.b16 %v128
    %v339 = vunpack.c.l.b16 %v129
    %v340 = vunpack.c.l.b16 %v130
    %v341 = vunpack.c.l.b16 %v131
    %v342 = vunpack.c.l.b16 %v132
    %v343 = vunpack.c.l.b16 %v133
    %v344 = vunpack.c.l.b16 %v134
    %v345 = vunpack.c.l.b16 %v135
    %v346 = vunpack.c.l.b16 %v136
    %v347 = vunpack.c.l.b16 %v137
    %v348 = vunpack.c.l.b16 %v138
    %v349 = vunpack.c.l.b16 %v139
    %v350 = vunpack.c.l.b16 %v140
    %v351 = vunpack.c.l.b16 %v141
    %v352 = vunpack.c.l.b16 %v142
    %v353 = vunpack.c.l.b16 %v143
    %v354 = vpack.c.b16 %v291, %v290
    %v355 = vpack.c.b16 %v293, %v292
    %v356 = vpack.c.b16 %v295, %v294
    %v357 = vpack.c.b16 %v297, %v296
    %v358 = vpack.c.b16 %v299, %v298
    %v359 = vpack.c.b16 %v301, %v300
    %v360 = vpack.c.b16 %v303, %v302
    %v361 = vpack.c.b16 %v305, %v304
    %v362 = vpack.c.b16 %v307, %v306
    %v363 = vpack.c.b16 %v309, %v308
    %v364 = vpack.c.b16 %v311, %v310
    %v365 = vpack.c.b16 %v313, %v312
    %v366 = vpack.c.b16 %v315, %v314
    %v367 = vpack.c.b16 %v317, %v316
    %v368 = vpack.c.b16 %v319, %v318
    %v369 = vpack.c.b16 %v321, %v320
    %v370 = vpack.c.b16 %v323, %v322
    %v371 = vpack.c.b16 %v325, %v324
    %v372 = vpack.c.b16 %v327, %v326
    %v373 = vpack.c.b16 %v329, %v328
    %v374 = vpack.c.b16 %v331, %v330
    %v375 = vpack.c.b16 %v333, %v332
    %v376 = vpack.c.b16 %v335, %v334
    %v377 = vpack.c.b16 %v337, %v336
    %v378 = vpack.c.b16 %v339, %v338
    %v379 = vpack.c.b16 %v341, %v340
    %v380 = vpack.c.b16 %v343, %v342
    %v381 = vpack.c.b16 %v345, %v344
    %v382 = vpack.c.b16 %v347, %v346
    %v383 = vpack.c.b16 %v349, %v348
    %v384 = vpack.c.b16 %v351, %v350
    %v385 = vpack.c.b16 %v353, %v352
    %418 = vmatprep.subr.bf16.mxu0 0
    %419 = vmatpush1.bf16.msra.mxu0 %v361
    %420 = vmatprep.subr.bf16.mxu0 0
    %421 = vmatpush1.bf16.msra.mxu0 %v360
    %422 = vmatprep.subr.bf16.mxu0 0
    %423 = vmatpush1.bf16.msra.mxu0 %v359
    %424 = vmatprep.subr.bf16.mxu0 0
    %425 = vmatpush1.bf16.msra.mxu0 %v358
    %426 = vmatprep.subr.bf16.mxu0 0
    %427 = vmatpush1.bf16.msra.mxu0 %v357
    %428 = vmatprep.subr.bf16.mxu0 0
    %429 = vmatpush1.bf16.msra.mxu0 %v356
    %430 = vmatprep.subr.bf16.mxu0 0
    %431 = vmatpush1.bf16.msra.mxu0 %v355
    %432 = vmatprep.subr.bf16.mxu0 0
    %433 = vmatpush1.bf16.msra.mxu0 %v354
    %434 = vmatprep.subr.bf16.mxu0 0
    %435 = vmatpush2.bf16.msra.mxu0 %v369
    %436 = vmatprep.subr.bf16.mxu0 0
    %437 = vmatpush2.bf16.msra.mxu0 %v368
    %438 = vmatprep.subr.bf16.mxu0 0
    %439 = vmatpush2.bf16.msra.mxu0 %v367
    %440 = vmatprep.subr.bf16.mxu0 0
    %441 = vmatpush2.bf16.msra.mxu0 %v366
    %442 = vmatprep.subr.bf16.mxu0 0
    %443 = vmatpush2.bf16.msra.mxu0 %v365
    %444 = vmatprep.subr.bf16.mxu0 0
    %445 = vmatpush2.bf16.msra.mxu0 %v364
    %446 = vmatprep.subr.bf16.mxu0 0
    %447 = vmatpush2.bf16.msra.mxu0 %v363
    %448 = vmatprep.subr.bf16.mxu0 0
    %449 = vmatpush2.bf16.msra.mxu0 %v362
    %450 = vmatprep.mubr.bf16.mxu0 %v77
    %451 = vmatmul.mubr.bf16.gmra.mxu0 %v76
    %v452 = vpop.f32.mrf.mxu0
    %v453 = vadd.f32 %v220, %v452
    %v454 = vpop.f32.mrf.mxu0
    %v455 = vpop.f32.mrf.mxu0
    %v456 = vadd.f32 %v223, %v455
    %v457 = vpop.f32.mrf.mxu0
    %458 = vdwg.mxu0
    %459 = vmatprep.subr.bf16.mxu0 0
    %460 = vmatpush1.bf16.msra.mxu0 %v377
    %461 = vmatprep.subr.bf16.mxu0 0
    %462 = vmatpush1.bf16.msra.mxu0 %v376
    %463 = vmatprep.subr.bf16.mxu0 0
    %464 = vmatpush1.bf16.msra.mxu0 %v375
    %465 = vmatprep.subr.bf16.mxu0 0
    %466 = vmatpush1.bf16.msra.mxu0 %v374
    %467 = vmatprep.subr.bf16.mxu0 0
    %468 = vmatpush1.bf16.msra.mxu0 %v373
    %469 = vmatprep.subr.bf16.mxu0 0
    %470 = vmatpush1.bf16.msra.mxu0 %v372
    %471 = vmatprep.subr.bf16.mxu0 0
    %472 = vmatpush1.bf16.msra.mxu0 %v371
    %473 = vmatprep.subr.bf16.mxu0 0
    %474 = vmatpush1.bf16.msra.mxu0 %v370
    %475 = vmatprep.subr.bf16.mxu0 0
    %476 = vmatpush2.bf16.msra.mxu0 %v385
    %477 = vmatprep.subr.bf16.mxu0 0
    %478 = vmatpush2.bf16.msra.mxu0 %v384
    %479 = vmatprep.subr.bf16.mxu0 0
    %480 = vmatpush2.bf16.msra.mxu0 %v383
    %481 = vmatprep.subr.bf16.mxu0 0
    %482 = vmatpush2.bf16.msra.mxu0 %v382
    %483 = vmatprep.subr.bf16.mxu0 0
    %484 = vmatpush2.bf16.msra.mxu0 %v381
    %485 = vmatprep.subr.bf16.mxu0 0
    %486 = vmatpush2.bf16.msra.mxu0 %v380
    %487 = vmatprep.subr.bf16.mxu0 0
    %488 = vmatpush2.bf16.msra.mxu0 %v379
    %489 = vmatprep.subr.bf16.mxu0 0
    %490 = vmatpush2.bf16.msra.mxu0 %v378
    %491 = vmatprep.mubr.bf16.mxu0 %v79
    %492 = vmatmul.mubr.bf16.gmra.mxu0 %v78
    %v493 = vpop.f32.mrf.mxu0
    %v494 = vadd.f32 %v453, %v493
    %v495 = vpop.f32.mrf.mxu0
    %v496 = vpop.f32.mrf.mxu0
    %v497 = vadd.f32 %v456, %v496
    %v498 = vpop.f32.mrf.mxu0
    %499 = vdwg.mxu0
    %v500 = vpack.c.bf16 %v497, %v494
    %v501 = vld [vmem:[#allocation5] sm:$0xff]
    %v502 = vld [vmem:[#allocation5 + $0x8] sm:$0xff]
    %v503 = vld [vmem:[#allocation5 + $0x10] sm:$0xff]
    %v504 = vld [vmem:[#allocation5 + $0x18] sm:$0xff]
    %v505 = vld [vmem:[#allocation5 + $0x20] sm:$0xff]
    %v506 = vld [vmem:[#allocation5 + $0x28] sm:$0xff]
    %v507 = vld [vmem:[#allocation5 + $0x30] sm:$0xff]
    %v508 = vld [vmem:[#allocation5 + $0x38] sm:$0xff]
    %v509 = vld [vmem:[#allocation5 + $0x40] sm:$0xff]
    %v510 = vld [vmem:[#allocation5 + $0x48] sm:$0xff]
    %v511 = vld [vmem:[#allocation5 + $0x50] sm:$0xff]
    %v512 = vld [vmem:[#allocation5 + $0x58] sm:$0xff]
    %v513 = vld [vmem:[#allocation5 + $0x60] sm:$0xff]
    %v514 = vld [vmem:[#allocation5 + $0x68] sm:$0xff]
    %v515 = vld [vmem:[#allocation5 + $0x70] sm:$0xff]
    %v516 = vld [vmem:[#allocation5 + $0x78] sm:$0xff]
    %v517 = vld [vmem:[#allocation5 + $0x80] sm:$0xff]
    %v518 = vld [vmem:[#allocation5 + $0x88] sm:$0xff]
    %v519 = vld [vmem:[#allocation5 + $0x90] sm:$0xff]
    %v520 = vld [vmem:[#allocation5 + $0x98] sm:$0xff]
    %v521 = vld [vmem:[#allocation5 + $0xa0] sm:$0xff]
    %v522 = vld [vmem:[#allocation5 + $0xa8] sm:$0xff]
    %v523 = vld [vmem:[#allocation5 + $0xb0] sm:$0xff]
    %v524 = vld [vmem:[#allocation5 + $0xb8] sm:$0xff]
    %v525 = vld [vmem:[#allocation5 + $0xc0] sm:$0xff]
    %v526 = vld [vmem:[#allocation5 + $0xc8] sm:$0xff]
    %v527 = vld [vmem:[#allocation5 + $0xd0] sm:$0xff]
    %v528 = vld [vmem:[#allocation5 + $0xd8] sm:$0xff]
    %v529 = vld [vmem:[#allocation5 + $0xe0] sm:$0xff]
    %v530 = vld [vmem:[#allocation5 + $0xe8] sm:$0xff]
    %v531 = vld [vmem:[#allocation5 + $0xf0] sm:$0xff]
    %v532 = vld [vmem:[#allocation5 + $0xf8] sm:$0xff]
    %v565 = vunpack.c.l.b16 %v501
    %v566 = vunpack.c.h.b16 %v501
    %v567 = vunpack.c.l.b16 %v502
    %v568 = vunpack.c.h.b16 %v502
    %v569 = vunpack.c.l.b16 %v503
    %v570 = vunpack.c.h.b16 %v503
    %v571 = vunpack.c.l.b16 %v504
    %v572 = vunpack.c.h.b16 %v504
    %v573 = vunpack.c.l.b16 %v505
    %v574 = vunpack.c.h.b16 %v505
    %v575 = vunpack.c.l.b16 %v506
    %v576 = vunpack.c.h.b16 %v506
    %v577 = vunpack.c.l.b16 %v507
    %v578 = vunpack.c.h.b16 %v507
    %v579 = vunpack.c.l.b16 %v508
    %v580 = vunpack.c.h.b16 %v508
    %v581 = vunpack.c.l.b16 %v509
    %v582 = vunpack.c.h.b16 %v509
    %v583 = vunpack.c.l.b16 %v510
    %v584 = vunpack.c.h.b16 %v510
    %v585 = vunpack.c.l.b16 %v511
    %v586 = vunpack.c.h.b16 %v511
    %v587 = vunpack.c.l.b16 %v512
    %v588 = vunpack.c.h.b16 %v512
    %v589 = vunpack.c.l.b16 %v513
    %v590 = vunpack.c.h.b16 %v513
    %v591 = vunpack.c.l.b16 %v514
    %v592 = vunpack.c.h.b16 %v514
    %v593 = vunpack.c.l.b16 %v515
    %v594 = vunpack.c.h.b16 %v515
    %v595 = vunpack.c.l.b16 %v516
    %v596 = vunpack.c.h.b16 %v516
    %v597 = vunpack.c.l.b16 %v517
    %v598 = vunpack.c.h.b16 %v517
    %v599 = vunpack.c.l.b16 %v518
    %v600 = vunpack.c.h.b16 %v518
    %v601 = vunpack.c.l.b16 %v519
    %v602 = vunpack.c.h.b16 %v519
    %v603 = vunpack.c.l.b16 %v520
    %v604 = vunpack.c.h.b16 %v520
    %v605 = vunpack.c.l.b16 %v521
    %v606 = vunpack.c.h.b16 %v521
    %v607 = vunpack.c.l.b16 %v522
    %v608 = vunpack.c.h.b16 %v522
    %v609 = vunpack.c.l.b16 %v523
    %v610 = vunpack.c.h.b16 %v523
    %v611 = vunpack.c.l.b16 %v524
    %v612 = vunpack.c.h.b16 %v524
    %v613 = vunpack.c.l.b16 %v525
    %v614 = vunpack.c.h.b16 %v525
    %v615 = vunpack.c.l.b16 %v526
    %v616 = vunpack.c.h.b16 %v526
    %v617 = vunpack.c.l.b16 %v527
    %v618 = vunpack.c.h.b16 %v527
    %v619 = vunpack.c.l.b16 %v528
    %v620 = vunpack.c.h.b16 %v528
    %v621 = vunpack.c.l.b16 %v529
    %v622 = vunpack.c.h.b16 %v529
    %v623 = vunpack.c.l.b16 %v530
    %v624 = vunpack.c.h.b16 %v530
    %v625 = vunpack.c.l.b16 %v531
    %v626 = vunpack.c.h.b16 %v531
    %v627 = vunpack.c.l.b16 %v532
    %v628 = vunpack.c.h.b16 %v532
    %v629 = vpack.c.b16 %v569, %v565
    %v630 = vpack.c.b16 %v570, %v566
    %v631 = vpack.c.b16 %v571, %v567
    %v632 = vpack.c.b16 %v572, %v568
    %v633 = vpack.c.b16 %v577, %v573
    %v634 = vpack.c.b16 %v578, %v574
    %v635 = vpack.c.b16 %v579, %v575
    %v636 = vpack.c.b16 %v580, %v576
    %v637 = vpack.c.b16 %v585, %v581
    %v638 = vpack.c.b16 %v586, %v582
    %v639 = vpack.c.b16 %v587, %v583
    %v640 = vpack.c.b16 %v588, %v584
    %v641 = vpack.c.b16 %v593, %v589
    %v642 = vpack.c.b16 %v594, %v590
    %v643 = vpack.c.b16 %v595, %v591
    %v644 = vpack.c.b16 %v596, %v592
    %v645 = vpack.c.b16 %v601, %v597
    %v646 = vpack.c.b16 %v602, %v598
    %v647 = vpack.c.b16 %v603, %v599
    %v648 = vpack.c.b16 %v604, %v600
    %v649 = vpack.c.b16 %v609, %v605
    %v650 = vpack.c.b16 %v610, %v606
    %v651 = vpack.c.b16 %v611, %v607
    %v652 = vpack.c.b16 %v612, %v608
    %v653 = vpack.c.b16 %v617, %v613
    %v654 = vpack.c.b16 %v618, %v614
    %v655 = vpack.c.b16 %v619, %v615
    %v656 = vpack.c.b16 %v620, %v616
    %v657 = vpack.c.b16 %v625, %v621
    %v658 = vpack.c.b16 %v626, %v622
    %v659 = vpack.c.b16 %v627, %v623
    %v660 = vpack.c.b16 %v628, %v624
    %693 = vmatprep.subr.bf16.mxu0 %v658
    %694 = vmatpush1.bf16.msra.mxu0 %v657
    %695 = vmatprep.subr.bf16.mxu0 %v654
    %696 = vmatpush1.bf16.msra.mxu0 %v653
    %697 = vmatprep.subr.bf16.mxu0 %v650
    %698 = vmatpush1.bf16.msra.mxu0 %v649
    %699 = vmatprep.subr.bf16.mxu0 %v646
    %700 = vmatpush1.bf16.msra.mxu0 %v645
    %701 = vmatprep.subr.bf16.mxu0 %v642
    %702 = vmatpush1.bf16.msra.mxu0 %v641
    %703 = vmatprep.subr.bf16.mxu0 %v638
    %704 = vmatpush1.bf16.msra.mxu0 %v637
    %705 = vmatprep.subr.bf16.mxu0 %v634
    %706 = vmatpush1.bf16.msra.mxu0 %v633
    %707 = vmatprep.subr.bf16.mxu0 %v630
    %708 = vmatpush1.bf16.msra.mxu0 %v629
    %709 = vmatprep.subr.bf16.mxu0 0
    %710 = vmatpush2.bf16.msra.mxu0 0
    %711 = vmatprep.subr.bf16.mxu0 0
    %712 = vmatpush2.bf16.msra.mxu0 0
    %713 = vmatprep.subr.bf16.mxu0 0
    %714 = vmatpush2.bf16.msra.mxu0 0
    %715 = vmatprep.subr.bf16.mxu0 0
    %716 = vmatpush2.bf16.msra.mxu0 0
    %717 = vmatprep.subr.bf16.mxu0 0
    %718 = vmatpush2.bf16.msra.mxu0 0
    %719 = vmatprep.subr.bf16.mxu0 0
    %720 = vmatpush2.bf16.msra.mxu0 0
    %721 = vmatprep.subr.bf16.mxu0 0
    %722 = vmatpush2.bf16.msra.mxu0 0
    %723 = vmatprep.subr.bf16.mxu0 0
    %724 = vmatpush2.bf16.msra.mxu0 0
    %725 = vmatprep.mubr.bf16.mxu0 0
    %726 = vmatmul.mubr.bf16.gmra.mxu0 %v500
    %v727 = vpop.f32.mrf.mxu0
    %v728 = vadd.f32 0.0, %v727
    %v729 = vpop.f32.mrf.mxu0
    %v730 = vadd.f32 0.0, %v729
    %v731 = vpop.f32.mrf.mxu0
    %v732 = vadd.f32 0.0, %v731
    %v733 = vpop.f32.mrf.mxu0
    %v734 = vadd.f32 0.0, %v733
    %735 = vdwg.mxu0
    %736 = vmatprep.subr.bf16.mxu0 %v660
    %737 = vmatpush1.bf16.msra.mxu0 %v659
    %738 = vmatprep.subr.bf16.mxu0 %v656
    %739 = vmatpush1.bf16.msra.mxu0 %v655
    %740 = vmatprep.subr.bf16.mxu0 %v652
    %741 = vmatpush1.bf16.msra.mxu0 %v651
    %742 = vmatprep.subr.bf16.mxu0 %v648
    %743 = vmatpush1.bf16.msra.mxu0 %v647
    %744 = vmatprep.subr.bf16.mxu0 %v644
    %745 = vmatpush1.bf16.msra.mxu0 %v643
    %746 = vmatprep.subr.bf16.mxu0 %v640
    %747 = vmatpush1.bf16.msra.mxu0 %v639
    %748 = vmatprep.subr.bf16.mxu0 %v636
    %749 = vmatpush1.bf16.msra.mxu0 %v635
    %750 = vmatprep.subr.bf16.mxu0 %v632
    %751 = vmatpush1.bf16.msra.mxu0 %v631
    %752 = vmatprep.subr.bf16.mxu0 0
    %753 = vmatpush2.bf16.msra.mxu0 0
    %754 = vmatprep.subr.bf16.mxu0 0
    %755 = vmatpush2.bf16.msra.mxu0 0
    %756 = vmatprep.subr.bf16.mxu0 0
    %757 = vmatpush2.bf16.msra.mxu0 0
    %758 = vmatprep.subr.bf16.mxu0 0
    %759 = vmatpush2.bf16.msra.mxu0 0
    %760 = vmatprep.subr.bf16.mxu0 0
    %761 = vmatpush2.bf16.msra.mxu0 0
    %762 = vmatprep.subr.bf16.mxu0 0
    %763 = vmatpush2.bf16.msra.mxu0 0
    %764 = vmatprep.subr.bf16.mxu0 0
    %765 = vmatpush2.bf16.msra.mxu0 0
    %766 = vmatprep.subr.bf16.mxu0 0
    %767 = vmatpush2.bf16.msra.mxu0 0
    %768 = vmatprep.mubr.bf16.mxu0 0
    %769 = vmatmul.mubr.bf16.gmra.mxu0 %v500
    %v770 = vpop.f32.mrf.mxu0
    %v771 = vadd.f32 0.0, %v770
    %v772 = vpop.f32.mrf.mxu0
    %v773 = vadd.f32 0.0, %v772
    %v774 = vpop.f32.mrf.mxu0
    %v775 = vadd.f32 0.0, %v774
    %v776 = vpop.f32.mrf.mxu0
    %v777 = vadd.f32 0.0, %v776
    %778 = vdwg.mxu0
    %779 = vst [vmem:[#allocation7] sm:$0xff] %v728
    %780 = vst [vmem:[#allocation7 + $0x8] sm:$0xff] %v730
    %781 = vst [vmem:[#allocation7 + $0x10] sm:$0xff] %v771
    %782 = vst [vmem:[#allocation7 + $0x18] sm:$0xff] %v773
    %783 = vst [vmem:[#allocation7 + $0x20] sm:$0xff] %v732
    %784 = vst [vmem:[#allocation7 + $0x28] sm:$0xff] %v734
    %785 = vst [vmem:[#allocation7 + $0x30] sm:$0xff] %v775
    %786 = vst [vmem:[#allocation7 + $0x38] sm:$0xff] %v777
    // Predicated region
    $region26: #{tpu_custom_call.1} parent=1 // pred_check
      _
    $region27: #{tpu_custom_call.1} parent=1 // pred_check_branch
      %788 = sbr.rel (0) target = $region29
    $region28: #{tpu_custom_call.1} parent=1 // pred_region
      %s790 = ssub.s32 1024, 1024
      %791 = vsyncadd [#allocation4], %s790
      %s792 = sshll.u32 [#allocation7], 4
      %s793 = int_to_ptr.vmem [resolvable:$true] %s792
      %798 = dma.vmem_to_hbm [thread:$0]  %s793, 1024, %s4, [#allocation4], 512, 512, 32
    $region29: #{tpu_custom_call.1} parent=1 // pred_fallthru
      _
    // Predicated region
    $region30: #{tpu_custom_call.1} parent=1 // pred_check
      _
    $region31: #{tpu_custom_call.1} parent=1 // pred_check_branch
      %800 = sbr.rel (0) target = $region33
    $region32: #{tpu_custom_call.1} parent=1 // pred_region
      %801 = dma.done [#allocation4], 1024
    $region33: #{tpu_custom_call.1} parent=1 // pred_fallthru
      _
    %802 = vsyncpa [#allocation3], 1
    %803 = vsyncpa [#allocation6], 1
    %804 = vsyncpa [#allocation4], 1

</llo_original>
